<compile_context>
chip_gen: v7x
topology: tpu7x:2x2x1
jax: 0.10.0
libtpu: 0.0.40
codegen_flags: <defaults>
</compile_context>

<pallas_src>
import functools

import jax
import jax.numpy as jnp
from jax.experimental import pallas as pl
from jax.experimental.pallas import tpu as pltpu

_LANE = 128


# ---------------------------------------------------------------------------
# helpers
# ---------------------------------------------------------------------------

def _round_up(x, m):
    return ((x + m - 1) // m) * m


@functools.lru_cache(maxsize=1)
def _vmem_budget_bytes():
    """Usable-VMEM budget for this TPU generation (headroom left for Mosaic)."""
    cap = 64 << 20                       # conservative fallback = v7x physical
    try:
        info = pltpu.get_tpu_info()
        cap_attr = getattr(info, "vmem_capacity_bytes", None)
        if cap_attr:
            cap = int(cap_attr)
    except Exception:
        pass
    # ~48 MiB on v7x (64 MiB physical), ~96 MiB on v5e/v6e (128 MiB physical).
    return (cap * 3) // 4


def _choose_tiles(Mp, K, resident_f32_blocks):
    """Pick (TM, TK, Kp) so the kernel fits the generation's VMEM budget.

    resident_f32_blocks: number of (TM, Mp) f32 buffers resident per row block
    (accumulator / target slab / double-buffered gram output).  The bf16
    feature streams cost 2 * (TM + Mp) * TK * 2 bytes (double-buffered).
    """
    budget = _vmem_budget_bytes()

    # TM: largest multiple of 128 dividing Mp whose resident f32 blocks stay
    # within half the budget; keep >= 2 row blocks when Mp allows it so v7x's
    # two TensorCores both get work (grid axis 0 is "parallel").
    tm_cap = Mp if Mp <= _LANE else min(max(Mp // 2, _LANE), 1024)
    tm = _LANE
    t = _LANE
    while t <= tm_cap:
        if Mp % t == 0 and resident_f32_blocks * t * Mp * 4 <= budget // 2:
            tm = t
        t += _LANE

    # TK: as large as the remaining budget allows for the double-buffered bf16
    # feature streams; then nudge down (>= 3/4 of max) if that removes K
    # zero-padding.  Kp is padded UP to a multiple of TK.
    kp128 = _round_up(max(K, _LANE), _LANE)
    resident = resident_f32_blocks * tm * Mp * 4 + 2 * tm * _LANE * 4
    per_tk = 2 * (tm + Mp) * 2
    tk_fit = max((budget - resident) // per_tk, _LANE)
    tk_cap = kp128 if kp128 <= 4096 else 2048
    tk_max = min(max((tk_fit // _LANE) * _LANE, _LANE), tk_cap)

    best_tk, best_kp = tk_max, _round_up(kp128, tk_max)
    t = tk_max - _LANE
    t_lo = max(_LANE, (3 * tk_max // 4) // _LANE * _LANE)
    while t >= t_lo:
        kp = _round_up(kp128, t)
        if kp < best_kp:
            best_tk, best_kp = t, kp
        t -= _LANE
    return tm, best_tk, best_kp


def _pad2(a, mp, kp):
    m, k = a.shape
    if m == mp and k == kp:
        return a
    return jnp.pad(a, ((0, mp - m), (0, kp - k)))


# ---------------------------------------------------------------------------
# kernels
# ---------------------------------------------------------------------------

def _gram_kernel(lhs_ref, rhs_ref, g_ref, *, scale):
    """One (TM, Mp) row block of G = scale * F @ F.T, K-streamed in bf16.

    grid = (Mp//TM 'parallel', Kp//TK 'arbitrary'); accumulation is f32
    directly in the resident output block; scale applied once at the end.
    """
    k = pl.program_id(1)

    @pl.when(k == 0)
    def _():
        g_ref[...] = jnp.zeros_like(g_ref)

    g_ref[...] += jax.lax.dot_general(
        lhs_ref[...], rhs_ref[...],
        dimension_numbers=(((1,), (1,)), ((), ())),
        preferred_element_type=jnp.float32)

    @pl.when(k == pl.num_programs(1) - 1)
    def _():
        g_ref[...] = g_ref[...] * scale


def _gram_mse_kernel(lhs_ref, rhs_ref, tgt_hbm, part_ref,
                     acc_ref, tgt_vmem, tgt_sem, *, tm, scale):
    """Row block of the gram, MSE'd against the matching target rows.

    The target lives in HBM (pl.ANY); its (TM, Mp) row slab is fetched with a
    single-buffered manual DMA started at k == 0 and waited on only in the
    finalize step, so the copy is hidden behind the whole K loop and no second
    pipeline buffer is reserved for a constant tensor.  Only a (TM, 1) partial
    sum of squared differences is written out per row block.
    """
    i = pl.program_id(0)
    k = pl.program_id(1)
    row0 = pl.multiple_of(i * tm, tm)

    @pl.when(k == 0)
    def _():
        acc_ref[...] = jnp.zeros_like(acc_ref)
        pltpu.make_async_copy(
            tgt_hbm.at[pl.ds(row0, tm), :], tgt_vmem, tgt_sem).start()

    acc_ref[...] += jax.lax.dot_general(
        lhs_ref[...], rhs_ref[...],
        dimension_numbers=(((1,), (1,)), ((), ())),
        preferred_element_type=jnp.float32)

    @pl.when(k == pl.num_programs(1) - 1)
    def _():
        pltpu.make_async_copy(
            tgt_hbm.at[pl.ds(row0, tm), :], tgt_vmem, tgt_sem).wait()
        diff = acc_ref[...] * scale - tgt_vmem[...]
        part_ref[...] = jnp.sum(diff * diff, axis=1, keepdims=True)


# ---------------------------------------------------------------------------
# wrappers
# ---------------------------------------------------------------------------

def target_gram_padded(features_2d, scale):
    """features_2d: (M, K) -> padded gram (Mp, Mp) f32, Mp = round_up(M, 128)."""
    M, K = features_2d.shape
    Mp = _round_up(max(M, 1), _LANE)
    TM, TK, Kp = _choose_tiles(Mp, K, resident_f32_blocks=2)
    feats = _pad2(features_2d.astype(jnp.bfloat16), Mp, Kp)

    kernel = functools.partial(_gram_kernel, scale=float(scale))
    nb = Mp // TM
    return pl.pallas_call(
        kernel,
        out_shape=jax.ShapeDtypeStruct((Mp, Mp), jnp.float32),
        grid_spec=pltpu.PrefetchScalarGridSpec(
            num_scalar_prefetch=0,
            grid=(nb, Kp // TK),
            in_specs=[
                pl.BlockSpec((TM, TK), lambda i, k: (i, k)),   # row block (bf16)
                pl.BlockSpec((Mp, TK), lambda i, k: (0, k)),   # all rows  (bf16)
            ],
            out_specs=pl.BlockSpec((TM, Mp), lambda i, k: (i, 0)),
        ),
        compiler_params=pltpu.CompilerParams(
            dimension_semantics=("parallel", "arbitrary"),
            vmem_limit_bytes=int(_vmem_budget_bytes())),
        cost_estimate=pl.CostEstimate(
            flops=2 * Mp * Mp * Kp,
            transcendentals=0,
            bytes_accessed=(nb + 1) * Mp * Kp * 2 + Mp * Mp * 4),
    )(feats, feats)


def gram_mse_loss(features_2d, target_p, scale, inv_count):
    """features_2d: (M, K); target_p: (Mp, Mp) padded target gram -> scalar."""
    M, K = features_2d.shape
    Mp = target_p.shape[0]
    TM, TK, Kp = _choose_tiles(Mp, K, resident_f32_blocks=2)
    feats = _pad2(features_2d.astype(jnp.bfloat16), Mp, Kp)

    kernel = functools.partial(_gram_mse_kernel, tm=TM, scale=float(scale))
    nb = Mp // TM
    partials = pl.pallas_call(
        kernel,
        out_shape=jax.ShapeDtypeStruct((Mp, 1), jnp.float32),
        grid_spec=pltpu.PrefetchScalarGridSpec(
            num_scalar_prefetch=0,
            grid=(nb, Kp // TK),
            in_specs=[
                pl.BlockSpec((TM, TK), lambda i, k: (i, k)),   # row block (bf16)
                pl.BlockSpec((Mp, TK), lambda i, k: (0, k)),   # all rows  (bf16)
                pl.BlockSpec(memory_space=pl.ANY),             # target gram (HBM)
            ],
            out_specs=pl.BlockSpec((TM, 1), lambda i, k: (i, 0)),
            scratch_shapes=[
                pltpu.VMEM((TM, Mp), jnp.float32),             # gram accumulator
                pltpu.VMEM((TM, Mp), jnp.float32),             # target row slab
                pltpu.SemaphoreType.DMA,                       # target copy sem
            ],
        ),
        compiler_params=pltpu.CompilerParams(
            dimension_semantics=("parallel", "arbitrary"),
            vmem_limit_bytes=int(_vmem_budget_bytes())),
        cost_estimate=pl.CostEstimate(
            flops=2 * Mp * Mp * Kp + 3 * Mp * Mp,
            transcendentals=0,
            bytes_accessed=(nb + 1) * Mp * Kp * 2 + Mp * Mp * 4 + Mp * 4),
    )(feats, feats, target_p)
    # Padded rows/cols contribute exactly 0; divide by the ORIGINAL M*M.
    return jnp.sum(partials) * inv_count


def _target_gram_impl(target_feature, *, scale):
    b, h, w, f = target_feature.shape
    return target_gram_padded(target_feature.reshape(b * h, w * f), scale)


def _loss_impl(x, target_p, *, scale, inv_count):
    b, h, w, f = x.shape
    return gram_mse_loss(x.reshape(b * h, w * f), target_p, scale, inv_count)


# ---------------------------------------------------------------------------
# module
# ---------------------------------------------------------------------------

class StyleLoss:
    """JAX/Pallas port of the PyTorch StyleLoss module."""

    def __init__(self, target_feature):
        target_feature = jnp.asarray(target_feature)
        b, h, w, f = target_feature.shape
        self._M = b * h
        self._K = w * f
        self._scale = 1.0 / float(b * h * w * f)
        self._inv_count = 1.0 / float(self._M * self._M)

        self._target_fn = jax.jit(
            functools.partial(_target_gram_impl, scale=self._scale))
        self._loss_fn = jax.jit(
            functools.partial(_loss_impl, scale=self._scale,
                              inv_count=self._inv_count))

        self._target_p = self._target_fn(target_feature)      # padded (Mp, Mp)
        self.target = self._target_p[: self._M, : self._M]    # torch parity
        # F.mse_loss(target, target) is identically zero -- no kernel launch.
        self.loss = jnp.float32(0.0)

    def __call__(self, x):
        # TODO(synk): self.loss is a Python-side mutation (matches the torch
        # module); it will not compose with jax.jit of a surrounding step --
        # return the loss instead when used inside a jitted loss function.
        self.loss = self._loss_fn(x, self._target_p)
        return x  # forward() is identity on the activations


# ---------------------------------------------------------------------------
# reference + test
# ---------------------------------------------------------------------------

def _ref_gram(t):
    b, h, w, f = t.shape
    feat = t.reshape(b * h, w * f)
    return (feat @ feat.T) / (b * h * w * f)


if __name__ == "__main__":
    key = jax.random.PRNGKey(0)
    k1, k2 = jax.random.split(key)

    # shapes consistent with gram_matrix's (batch, h, w, f_map_num) view
    shape = (2, 4, 16, 16)
    target_feature = jax.random.normal(k1, shape, dtype=jnp.float32)
    x = jax.random.normal(k2, shape, dtype=jnp.float32)

    module = StyleLoss(target_feature)
    assert float(module.loss) == 0.0          # init semantics: mse(T, T) == 0

    out = module(x)
    out = jax.block_until_ready(out)
    loss = jax.block_until_ready(module.loss)

    ref_T = _ref_gram(target_feature)
    ref_loss = jnp.mean((_ref_gram(x) - ref_T) ** 2)

    assert out.shape == x.shape
    assert jnp.allclose(out, x)
    # bf16 MXU inputs (f32 accumulation): relaxed tolerance vs the f32 reference.
    assert jnp.allclose(module.target, ref_T, rtol=2e-2, atol=2e-3)
    assert jnp.allclose(loss, ref_loss, rtol=5e-2, atol=1e-6)

    print("KERNEL_OK")
</pallas_src>

<mosaic_0001>
module attributes {stable_mosaic.version = 11 : i64} {
  func.func @_gram_kernel(%arg0: i32, %arg1: i32, %arg2: memref<128x256xbf16, #tpu.memory_space<vmem>>, %arg3: memref<128x256xbf16, #tpu.memory_space<vmem>>, %arg4: memref<128x128xf32, #tpu.memory_space<vmem>>) attributes {dimension_semantics = [#tpu.dimension_semantics<parallel>, #tpu.dimension_semantics<arbitrary>], iteration_bounds = array<i64: 1, 1>, scalar_prefetch = 0 : i64, scratch_operands = 0 : i64, tpu.core_type = #tpu.core_type<tc>, window_params = [{transform_indices = @transform_0, window_bounds = array<i64: 128, 256>}, {transform_indices = @transform_1, window_bounds = array<i64: 128, 256>}, {transform_indices = @transform_2, window_bounds = array<i64: 128, 128>}]} {
    %c0_i32 = arith.constant 0 : i32
    %0 = arith.cmpi eq, %arg1, %c0_i32 : i32
    %1 = arith.extui %0 : i1 to i32
    %c0_i32_0 = arith.constant 0 : i32
    %2 = arith.cmpi ne, %1, %c0_i32_0 : i32
    scf.if %2 {
      %cst_10 = arith.constant 0.000000e+00 : f32
      %12 = vector.broadcast %cst_10 : f32 to vector<128x128xf32>
      %c0_11 = arith.constant 0 : index
      %c0_12 = arith.constant 0 : index
      %13 = vector.load %arg4[%c0_11, %c0_12] : memref<128x128xf32, #tpu.memory_space<vmem>>, vector<128x128xf32>
      tpu.vector_store %arg4[%c0_11, %c0_12], %12 {strides = array<i32>} : memref<128x128xf32, #tpu.memory_space<vmem>>, vector<128x128xf32>,
    } else {
    }
    %c0 = arith.constant 0 : index
    %c0_1 = arith.constant 0 : index
    %3 = vector.load %arg4[%c0, %c0_1] : memref<128x128xf32, #tpu.memory_space<vmem>>, vector<128x128xf32>
    %c0_2 = arith.constant 0 : index
    %c0_3 = arith.constant 0 : index
    %4 = vector.load %arg2[%c0_2, %c0_3] : memref<128x256xbf16, #tpu.memory_space<vmem>>, vector<128x256xbf16>
    %c0_4 = arith.constant 0 : index
    %c0_5 = arith.constant 0 : index
    %5 = vector.load %arg3[%c0_4, %c0_5] : memref<128x256xbf16, #tpu.memory_space<vmem>>, vector<128x256xbf16>
    %cst = arith.constant dense<0.000000e+00> : vector<128x128xf32>
    %6 = tpu.matmul %4, %5, %cst {dimension_numbers = #tpu.dot_dimension_numbers<[1], [1], [0], [0], [0, 0, 1, 0], [], []>} : vector<128x256xbf16>, vector<128x256xbf16>, vector<128x128xf32> -> vector<128x128xf32>
    %7 = arith.addf %3, %6 : vector<128x128xf32>
    %c0_6 = arith.constant 0 : index
    %c0_7 = arith.constant 0 : index
    %8 = vector.load %arg4[%c0_6, %c0_7] : memref<128x128xf32, #tpu.memory_space<vmem>>, vector<128x128xf32>
    tpu.vector_store %arg4[%c0_6, %c0_7], %7 {strides = array<i32>} : memref<128x128xf32, #tpu.memory_space<vmem>>, vector<128x128xf32>,
    %c0_i32_8 = arith.constant 0 : i32
    %9 = arith.cmpi eq, %arg1, %c0_i32_8 : i32
    %10 = arith.extui %9 : i1 to i32
    %c0_i32_9 = arith.constant 0 : i32
    %11 = arith.cmpi ne, %10, %c0_i32_9 : i32
    scf.if %11 {
      %c0_10 = arith.constant 0 : index
      %c0_11 = arith.constant 0 : index
      %12 = vector.load %arg4[%c0_10, %c0_11] : memref<128x128xf32, #tpu.memory_space<vmem>>, vector<128x128xf32>
      %cst_12 = arith.constant 4.8828125E-4 : f32
      %13 = vector.broadcast %cst_12 : f32 to vector<128x128xf32>
      %14 = arith.mulf %12, %13 : vector<128x128xf32>
      %c0_13 = arith.constant 0 : index
      %c0_14 = arith.constant 0 : index
      %15 = vector.load %arg4[%c0_13, %c0_14] : memref<128x128xf32, #tpu.memory_space<vmem>>, vector<128x128xf32>
      tpu.vector_store %arg4[%c0_13, %c0_14], %14 {strides = array<i32>} : memref<128x128xf32, #tpu.memory_space<vmem>>, vector<128x128xf32>,
    } else {
    }
    return
  }
  func.func @transform_0(%arg0: i32, %arg1: i32) -> (i32, i32) {
    %c0_i32 = arith.constant 0 : i32
    return %arg0, %arg1 : i32, i32
  }
  func.func @transform_1(%arg0: i32, %arg1: i32) -> (i32, i32) {
    %c0_i32 = arith.constant 0 : i32
    %c0_i32_0 = arith.constant 0 : i32
    return %c0_i32, %arg1 : i32, i32
  }
  func.func @transform_2(%arg0: i32, %arg1: i32) -> (i32, i32) {
    %c0_i32 = arith.constant 0 : i32
    %c0_i32_0 = arith.constant 0 : i32
    return %arg0, %c0_i32 : i32, i32
  }
}

</mosaic_0001>

<llo_original>
// kernel: _target_gram_impl.1
$region0: #{_target_gram_impl.1}
  #allocation0 [shape = 'u32[]', space=smem, size = 0x4, offset = 0x4, fixed_abs, tag = 'smem constant byte address 0x4 - core index']
  #allocation1 [shape = 'u32[144,128]{1,0:T(1,128)}', space=vmem, size = 0x12000, scoped, tag = 'internal scratch']
  %s0 = inlined_call_operand.vmem [shape: bf16[128,256], index: 0, kind: input, shape index: {}, may-alias: {0,1}]
  %s1 = inlined_call_operand.vmem [shape: bf16[128,256], index: 1, kind: input, shape index: {}, may-alias: {0,1}]
  %s2 = inlined_call_operand.hbm [shape: f32[128,128], index: 2, kind: output, shape index: {}]
  %s3 = sld [smem:[#allocation0]]
  $region26: #{_target_gram_impl.1} parent=0
    _
  %s5 = ssub.s32 1, %s3
  %s6 = scalar_select 0, %s5, %s3
  $region1: #{_target_gram_impl.1} parent=0
    #allocation2 [shape = 'u8[65536]{0}', space=vmem, size = 0x10000, scoped, tag = 'output window, operand 0, single buffered']
    #allocation3 [shape = 's32[1]{0}', space=sflag, size = 0x4, scoped, tag = 'scoped memory for _target_gram_impl.1']
    %7 = vsyncpa [#allocation3], 0
    // Predicated region
    $region2: #{_target_gram_impl.1} parent=1 // pred_check
      _
    $region3: #{_target_gram_impl.1} parent=1 // pred_check_branch
      %9 = sbr.rel (0) target = $region5
    $region4: #{_target_gram_impl.1} parent=1 // pred_region
      _
    $region5: #{_target_gram_impl.1} parent=1 // pred_fallthru
      _
    // Predicated region
    $region6: #{_target_gram_impl.1} parent=1 // pred_check
      _
    $region7: #{_target_gram_impl.1} parent=1 // pred_check_branch
      %11 = sbr.rel (0) target = $region9
    $region8: #{_target_gram_impl.1} parent=1 // pred_region
      _
    $region9: #{_target_gram_impl.1} parent=1 // pred_fallthru
      _
    %p13 = scmp.eq.s32.totalorder 0, 0
    // Predicated region
    $region10: #{_target_gram_impl.1} parent=1 // pred_check
      %p14 = pneg %p13
    $region11: #{_target_gram_impl.1} parent=1 // pred_check_branch
      %16 = sbr.rel (%p14) target = $region13
    $region12: #{_target_gram_impl.1} parent=1 // pred_region
      %17 = vst [vmem:[#allocation2] sm:$0xff] 0.0
      %18 = vst [vmem:[#allocation2 + $0x8] sm:$0xff] 0.0
      %19 = vst [vmem:[#allocation2 + $0x10] sm:$0xff] 0.0
      %20 = vst [vmem:[#allocation2 + $0x18] sm:$0xff] 0.0
      %21 = vst [vmem:[#allocation2 + $0x20] sm:$0xff] 0.0
      %22 = vst [vmem:[#allocation2 + $0x28] sm:$0xff] 0.0
      %23 = vst [vmem:[#allocation2 + $0x30] sm:$0xff] 0.0
      %24 = vst [vmem:[#allocation2 + $0x38] sm:$0xff] 0.0
      %25 = vst [vmem:[#allocation2 + $0x40] sm:$0xff] 0.0
      %26 = vst [vmem:[#allocation2 + $0x48] sm:$0xff] 0.0
      %27 = vst [vmem:[#allocation2 + $0x50] sm:$0xff] 0.0
      %28 = vst [vmem:[#allocation2 + $0x58] sm:$0xff] 0.0
      %29 = vst [vmem:[#allocation2 + $0x60] sm:$0xff] 0.0
      %30 = vst [vmem:[#allocation2 + $0x68] sm:$0xff] 0.0
      %31 = vst [vmem:[#allocation2 + $0x70] sm:$0xff] 0.0
      %32 = vst [vmem:[#allocation2 + $0x78] sm:$0xff] 0.0
    $region13: #{_target_gram_impl.1} parent=1 // pred_fallthru
      _
    %v33 = vld [vmem:[#allocation2] sm:$0xff]
    %v34 = vld [vmem:[#allocation2 + $0x8] sm:$0xff]
    %v35 = vld [vmem:[#allocation2 + $0x10] sm:$0xff]
    %v36 = vld [vmem:[#allocation2 + $0x18] sm:$0xff]
    %v37 = vld [vmem:[#allocation2 + $0x20] sm:$0xff]
    %v38 = vld [vmem:[#allocation2 + $0x28] sm:$0xff]
    %v39 = vld [vmem:[#allocation2 + $0x30] sm:$0xff]
    %v40 = vld [vmem:[#allocation2 + $0x38] sm:$0xff]
    %v41 = vld [vmem:[#allocation2 + $0x40] sm:$0xff]
    %v42 = vld [vmem:[#allocation2 + $0x48] sm:$0xff]
    %v43 = vld [vmem:[#allocation2 + $0x50] sm:$0xff]
    %v44 = vld [vmem:[#allocation2 + $0x58] sm:$0xff]
    %v45 = vld [vmem:[#allocation2 + $0x60] sm:$0xff]
    %v46 = vld [vmem:[#allocation2 + $0x68] sm:$0xff]
    %v47 = vld [vmem:[#allocation2 + $0x70] sm:$0xff]
    %v48 = vld [vmem:[#allocation2 + $0x78] sm:$0xff]
    %v49 = vld [vmem:[%s0] sm:$0xff]
    %v50 = vld [vmem:[%s0 + $0x8] sm:$0xff]
    %v51 = vld [vmem:[%s0 + $0x10] sm:$0xff]
    %v52 = vld [vmem:[%s0 + $0x18] sm:$0xff]
    %v53 = vld [vmem:[%s0 + $0x20] sm:$0xff]
    %v54 = vld [vmem:[%s0 + $0x28] sm:$0xff]
    %v55 = vld [vmem:[%s0 + $0x30] sm:$0xff]
    %v56 = vld [vmem:[%s0 + $0x38] sm:$0xff]
    %v57 = vld [vmem:[%s0 + $0x40] sm:$0xff]
    %v58 = vld [vmem:[%s0 + $0x48] sm:$0xff]
    %v59 = vld [vmem:[%s0 + $0x50] sm:$0xff]
    %v60 = vld [vmem:[%s0 + $0x58] sm:$0xff]
    %v61 = vld [vmem:[%s0 + $0x60] sm:$0xff]
    %v62 = vld [vmem:[%s0 + $0x68] sm:$0xff]
    %v63 = vld [vmem:[%s0 + $0x70] sm:$0xff]
    %v64 = vld [vmem:[%s0 + $0x78] sm:$0xff]
    %v65 = vld [vmem:[%s1] sm:$0xff]
    %v66 = vld [vmem:[%s1 + $0x8] sm:$0xff]
    %v67 = vld [vmem:[%s1 + $0x10] sm:$0xff]
    %v68 = vld [vmem:[%s1 + $0x18] sm:$0xff]
    %v69 = vld [vmem:[%s1 + $0x20] sm:$0xff]
    %v70 = vld [vmem:[%s1 + $0x28] sm:$0xff]
    %v71 = vld [vmem:[%s1 + $0x30] sm:$0xff]
    %v72 = vld [vmem:[%s1 + $0x38] sm:$0xff]
    %v73 = vld [vmem:[%s1 + $0x40] sm:$0xff]
    %v74 = vld [vmem:[%s1 + $0x48] sm:$0xff]
    %v75 = vld [vmem:[%s1 + $0x50] sm:$0xff]
    %v76 = vld [vmem:[%s1 + $0x58] sm:$0xff]
    %v77 = vld [vmem:[%s1 + $0x60] sm:$0xff]
    %v78 = vld [vmem:[%s1 + $0x68] sm:$0xff]
    %v79 = vld [vmem:[%s1 + $0x70] sm:$0xff]
    %v80 = vld [vmem:[%s1 + $0x78] sm:$0xff]
    %v97 = vunpack.c.l.b16 %v49
    %v98 = vunpack.c.h.b16 %v49
    %v99 = vunpack.c.l.b16 %v50
    %v100 = vunpack.c.h.b16 %v50
    %v101 = vunpack.c.l.b16 %v51
    %v102 = vunpack.c.h.b16 %v51
    %v103 = vunpack.c.l.b16 %v52
    %v104 = vunpack.c.h.b16 %v52
    %v105 = vunpack.c.l.b16 %v53
    %v106 = vunpack.c.h.b16 %v53
    %v107 = vunpack.c.l.b16 %v54
    %v108 = vunpack.c.h.b16 %v54
    %v109 = vunpack.c.l.b16 %v55
    %v110 = vunpack.c.h.b16 %v55
    %v111 = vunpack.c.l.b16 %v56
    %v112 = vunpack.c.h.b16 %v56
    %v113 = vunpack.c.l.b16 %v57
    %v114 = vunpack.c.h.b16 %v57
    %v115 = vunpack.c.l.b16 %v58
    %v116 = vunpack.c.h.b16 %v58
    %v117 = vunpack.c.l.b16 %v59
    %v118 = vunpack.c.h.b16 %v59
    %v119 = vunpack.c.l.b16 %v60
    %v120 = vunpack.c.h.b16 %v60
    %v121 = vunpack.c.l.b16 %v61
    %v122 = vunpack.c.h.b16 %v61
    %v123 = vunpack.c.l.b16 %v62
    %v124 = vunpack.c.h.b16 %v62
    %v125 = vunpack.c.l.b16 %v63
    %v126 = vunpack.c.h.b16 %v63
    %v127 = vunpack.c.l.b16 %v64
    %v128 = vunpack.c.h.b16 %v64
    %v129 = vpack.c.b16 %v99, %v97
    %v130 = vpack.c.b16 %v100, %v98
    %v131 = vpack.c.b16 %v103, %v101
    %v132 = vpack.c.b16 %v104, %v102
    %v133 = vpack.c.b16 %v107, %v105
    %v134 = vpack.c.b16 %v108, %v106
    %v135 = vpack.c.b16 %v111, %v109
    %v136 = vpack.c.b16 %v112, %v110
    %v137 = vpack.c.b16 %v115, %v113
    %v138 = vpack.c.b16 %v116, %v114
    %v139 = vpack.c.b16 %v119, %v117
    %v140 = vpack.c.b16 %v120, %v118
    %v141 = vpack.c.b16 %v123, %v121
    %v142 = vpack.c.b16 %v124, %v122
    %v143 = vpack.c.b16 %v127, %v125
    %v144 = vpack.c.b16 %v128, %v126
    %v177 = vunpack.c.l.b16 %v65
    %v178 = vunpack.c.h.b16 %v65
    %v179 = vunpack.c.l.b16 %v66
    %v180 = vunpack.c.h.b16 %v66
    %v181 = vunpack.c.l.b16 %v67
    %v182 = vunpack.c.h.b16 %v67
    %v183 = vunpack.c.l.b16 %v68
    %v184 = vunpack.c.h.b16 %v68
    %v185 = vunpack.c.l.b16 %v69
    %v186 = vunpack.c.h.b16 %v69
    %v187 = vunpack.c.l.b16 %v70
    %v188 = vunpack.c.h.b16 %v70
    %v189 = vunpack.c.l.b16 %v71
    %v190 = vunpack.c.h.b16 %v71
    %v191 = vunpack.c.l.b16 %v72
    %v192 = vunpack.c.h.b16 %v72
    %v193 = vunpack.c.l.b16 %v73
    %v194 = vunpack.c.h.b16 %v73
    %v195 = vunpack.c.l.b16 %v74
    %v196 = vunpack.c.h.b16 %v74
    %v197 = vunpack.c.l.b16 %v75
    %v198 = vunpack.c.h.b16 %v75
    %v199 = vunpack.c.l.b16 %v76
    %v200 = vunpack.c.h.b16 %v76
    %v201 = vunpack.c.l.b16 %v77
    %v202 = vunpack.c.h.b16 %v77
    %v203 = vunpack.c.l.b16 %v78
    %v204 = vunpack.c.h.b16 %v78
    %v205 = vunpack.c.l.b16 %v79
    %v206 = vunpack.c.h.b16 %v79
    %v207 = vunpack.c.l.b16 %v80
    %v208 = vunpack.c.h.b16 %v80
    %v209 = vpack.c.b16 %v179, %v177
    %v210 = vpack.c.b16 %v180, %v178
    %v211 = vpack.c.b16 %v183, %v181
    %v212 = vpack.c.b16 %v184, %v182
    %v213 = vpack.c.b16 %v187, %v185
    %v214 = vpack.c.b16 %v188, %v186
    %v215 = vpack.c.b16 %v191, %v189
    %v216 = vpack.c.b16 %v192, %v190
    %v217 = vpack.c.b16 %v195, %v193
    %v218 = vpack.c.b16 %v196, %v194
    %v219 = vpack.c.b16 %v199, %v197
    %v220 = vpack.c.b16 %v200, %v198
    %v221 = vpack.c.b16 %v203, %v201
    %v222 = vpack.c.b16 %v204, %v202
    %v223 = vpack.c.b16 %v207, %v205
    %v224 = vpack.c.b16 %v208, %v206
    %241 = vmatprep.subr.bf16.mxu0 %v210
    %242 = vmatpush1.bf16.xpose.msra.mxu0 %v209
    %243 = vmatprep.subr.bf16.mxu0 %v212
    %244 = vmatpush1.bf16.xpose.msra.mxu0 %v211
    %245 = vmatprep.subr.bf16.mxu0 %v214
    %246 = vmatpush1.bf16.xpose.msra.mxu0 %v213
    %247 = vmatprep.subr.bf16.mxu0 %v216
    %248 = vmatpush1.bf16.xpose.msra.mxu0 %v215
    %249 = vmatprep.subr.bf16.mxu0 %v218
    %250 = vmatpush1.bf16.xpose.msra.mxu0 %v217
    %251 = vmatprep.subr.bf16.mxu0 %v220
    %252 = vmatpush1.bf16.xpose.msra.mxu0 %v219
    %253 = vmatprep.subr.bf16.mxu0 %v222
    %254 = vmatpush1.bf16.xpose.msra.mxu0 %v221
    %255 = vmatprep.subr.bf16.mxu0 %v224
    %256 = vmatpush1.bf16.xpose.msra.mxu0 %v223
    %257 = vmatprep.subr.bf16.mxu0 0
    %258 = vmatpush1.bf16.xpose.msra.mxu0 0
    %259 = vmatprep.subr.bf16.mxu0 0
    %260 = vmatpush1.bf16.xpose.msra.mxu0 0
    %261 = vmatprep.subr.bf16.mxu0 0
    %262 = vmatpush1.bf16.xpose.msra.mxu0 0
    %263 = vmatprep.subr.bf16.mxu0 0
    %264 = vmatpush1.bf16.xpose.msra.mxu0 0
    %265 = vmatprep.subr.bf16.mxu0 0
    %266 = vmatpush1.bf16.xpose.msra.mxu0 0
    %267 = vmatprep.subr.bf16.mxu0 0
    %268 = vmatpush1.bf16.xpose.msra.mxu0 0
    %269 = vmatprep.subr.bf16.mxu0 0
    %270 = vmatpush1.bf16.xpose.msra.mxu0 0
    %271 = vmatprep.subr.bf16.mxu0 0
    %272 = vmatpush1.bf16.xpose.msra.mxu0 0
    %273 = vmatprep.mubr.bf16.mxu0 %v130
    %274 = vmatmul.mubr.bf16.gmra.mrb[0].mxu0 %v129
    %v275 = vpop.f32.mrb[0].mxu0
    %v276 = vadd.f32 0.0, %v275
    %v277 = vpop.f32.mrb[0].mxu0
    %v278 = vpop.f32.mrb[0].mxu0
    %v279 = vadd.f32 0.0, %v278
    %v280 = vpop.f32.mrb[0].mxu0
    %281 = vmatprep.mubr.bf16.mxu0 %v132
    %282 = vmatmul.mubr.bf16.gmra.mrb[0].mxu0 %v131
    %v283 = vpop.f32.mrb[0].mxu0
    %v284 = vadd.f32 0.0, %v283
    %v285 = vpop.f32.mrb[0].mxu0
    %v286 = vpop.f32.mrb[0].mxu0
    %v287 = vadd.f32 0.0, %v286
    %v288 = vpop.f32.mrb[0].mxu0
    %289 = vmatprep.mubr.bf16.mxu0 %v134
    %290 = vmatmul.mubr.bf16.gmra.mrb[0].mxu0 %v133
    %v291 = vpop.f32.mrb[0].mxu0
    %v292 = vadd.f32 0.0, %v291
    %v293 = vpop.f32.mrb[0].mxu0
    %v294 = vpop.f32.mrb[0].mxu0
    %v295 = vadd.f32 0.0, %v294
    %v296 = vpop.f32.mrb[0].mxu0
    %297 = vmatprep.mubr.bf16.mxu0 %v136
    %298 = vmatmul.mubr.bf16.gmra.mrb[0].mxu0 %v135
    %v299 = vpop.f32.mrb[0].mxu0
    %v300 = vadd.f32 0.0, %v299
    %v301 = vpop.f32.mrb[0].mxu0
    %v302 = vpop.f32.mrb[0].mxu0
    %v303 = vadd.f32 0.0, %v302
    %v304 = vpop.f32.mrb[0].mxu0
    %305 = vmatprep.mubr.bf16.mxu0 %v138
    %306 = vmatmul.mubr.bf16.gmra.mrb[0].mxu0 %v137
    %v307 = vpop.f32.mrb[0].mxu0
    %v308 = vadd.f32 0.0, %v307
    %v309 = vpop.f32.mrb[0].mxu0
    %v310 = vpop.f32.mrb[0].mxu0
    %v311 = vadd.f32 0.0, %v310
    %v312 = vpop.f32.mrb[0].mxu0
    %313 = vmatprep.mubr.bf16.mxu0 %v140
    %314 = vmatmul.mubr.bf16.gmra.mrb[0].mxu0 %v139
    %v315 = vpop.f32.mrb[0].mxu0
    %v316 = vadd.f32 0.0, %v315
    %v317 = vpop.f32.mrb[0].mxu0
    %v318 = vpop.f32.mrb[0].mxu0
    %v319 = vadd.f32 0.0, %v318
    %v320 = vpop.f32.mrb[0].mxu0
    %321 = vmatprep.mubr.bf16.mxu0 %v142
    %322 = vmatmul.mubr.bf16.gmra.mrb[0].mxu0 %v141
    %v323 = vpop.f32.mrb[0].mxu0
    %v324 = vadd.f32 0.0, %v323
    %v325 = vpop.f32.mrb[0].mxu0
    %v326 = vpop.f32.mrb[0].mxu0
    %v327 = vadd.f32 0.0, %v326
    %v328 = vpop.f32.mrb[0].mxu0
    %329 = vmatprep.mubr.bf16.mxu0 %v144
    %330 = vmatmul.mubr.bf16.gmra.mrb[0].mxu0 %v143
    %v331 = vpop.f32.mrb[0].mxu0
    %v332 = vadd.f32 0.0, %v331
    %v333 = vpop.f32.mrb[0].mxu0
    %v334 = vpop.f32.mrb[0].mxu0
    %v335 = vadd.f32 0.0, %v334
    %v336 = vpop.f32.mrb[0].mxu0
    %337 = vdwg.mxu0
    %v338 = vadd.f32 %v33, %v276
    %v339 = vadd.f32 %v34, %v279
    %v340 = vadd.f32 %v35, %v284
    %v341 = vadd.f32 %v36, %v287
    %v342 = vadd.f32 %v37, %v292
    %v343 = vadd.f32 %v38, %v295
    %v344 = vadd.f32 %v39, %v300
    %v345 = vadd.f32 %v40, %v303
    %v346 = vadd.f32 %v41, %v308
    %v347 = vadd.f32 %v42, %v311
    %v348 = vadd.f32 %v43, %v316
    %v349 = vadd.f32 %v44, %v319
    %v350 = vadd.f32 %v45, %v324
    %v351 = vadd.f32 %v46, %v327
    %v352 = vadd.f32 %v47, %v332
    %v353 = vadd.f32 %v48, %v335
    %354 = vst [vmem:[#allocation2] sm:$0xff] %v338
    %355 = vst [vmem:[#allocation2 + $0x8] sm:$0xff] %v339
    %356 = vst [vmem:[#allocation2 + $0x10] sm:$0xff] %v340
    %357 = vst [vmem:[#allocation2 + $0x18] sm:$0xff] %v341
    %358 = vst [vmem:[#allocation2 + $0x20] sm:$0xff] %v342
    %359 = vst [vmem:[#allocation2 + $0x28] sm:$0xff] %v343
    %360 = vst [vmem:[#allocation2 + $0x30] sm:$0xff] %v344
    %361 = vst [vmem:[#allocation2 + $0x38] sm:$0xff] %v345
    %362 = vst [vmem:[#allocation2 + $0x40] sm:$0xff] %v346
    %363 = vst [vmem:[#allocation2 + $0x48] sm:$0xff] %v347
    %364 = vst [vmem:[#allocation2 + $0x50] sm:$0xff] %v348
    %365 = vst [vmem:[#allocation2 + $0x58] sm:$0xff] %v349
    %366 = vst [vmem:[#allocation2 + $0x60] sm:$0xff] %v350
    %367 = vst [vmem:[#allocation2 + $0x68] sm:$0xff] %v351
    %368 = vst [vmem:[#allocation2 + $0x70] sm:$0xff] %v352
    %369 = vst [vmem:[#allocation2 + $0x78] sm:$0xff] %v353
    // Predicated region
    $region14: #{_target_gram_impl.1} parent=1 // pred_check
      %p370 = pneg %p13
    $region15: #{_target_gram_impl.1} parent=1 // pred_check_branch
      %372 = sbr.rel (%p370) target = $region17
    $region16: #{_target_gram_impl.1} parent=1 // pred_region
      %v373 = vld [vmem:[#allocation2] sm:$0xff]
      %v374 = vld [vmem:[#allocation2 + $0x8] sm:$0xff]
      %v375 = vld [vmem:[#allocation2 + $0x10] sm:$0xff]
      %v376 = vld [vmem:[#allocation2 + $0x18] sm:$0xff]
      %v377 = vld [vmem:[#allocation2 + $0x20] sm:$0xff]
      %v378 = vld [vmem:[#allocation2 + $0x28] sm:$0xff]
      %v379 = vld [vmem:[#allocation2 + $0x30] sm:$0xff]
      %v380 = vld [vmem:[#allocation2 + $0x38] sm:$0xff]
      %v381 = vld [vmem:[#allocation2 + $0x40] sm:$0xff]
      %v382 = vld [vmem:[#allocation2 + $0x48] sm:$0xff]
      %v383 = vld [vmem:[#allocation2 + $0x50] sm:$0xff]
      %v384 = vld [vmem:[#allocation2 + $0x58] sm:$0xff]
      %v385 = vld [vmem:[#allocation2 + $0x60] sm:$0xff]
      %v386 = vld [vmem:[#allocation2 + $0x68] sm:$0xff]
      %v387 = vld [vmem:[#allocation2 + $0x70] sm:$0xff]
      %v388 = vld [vmem:[#allocation2 + $0x78] sm:$0xff]
      %v389 = vmul.f32 %v373, 0.00048828125
      %v390 = vmul.f32 %v374, 0.00048828125
      %v391 = vmul.f32 %v375, 0.00048828125
      %v392 = vmul.f32 %v376, 0.00048828125
      %v393 = vmul.f32 %v377, 0.00048828125
      %v394 = vmul.f32 %v378, 0.00048828125
      %v395 = vmul.f32 %v379, 0.00048828125
      %v396 = vmul.f32 %v380, 0.00048828125
      %v397 = vmul.f32 %v381, 0.00048828125
      %v398 = vmul.f32 %v382, 0.00048828125
      %v399 = vmul.f32 %v383, 0.00048828125
      %v400 = vmul.f32 %v384, 0.00048828125
      %v401 = vmul.f32 %v385, 0.00048828125
      %v402 = vmul.f32 %v386, 0.00048828125
      %v403 = vmul.f32 %v387, 0.00048828125
      %v404 = vmul.f32 %v388, 0.00048828125
      %405 = vst [vmem:[#allocation2] sm:$0xff] %v389
      %406 = vst [vmem:[#allocation2 + $0x8] sm:$0xff] %v390
      %407 = vst [vmem:[#allocation2 + $0x10] sm:$0xff] %v391
      %408 = vst [vmem:[#allocation2 + $0x18] sm:$0xff] %v392
      %409 = vst [vmem:[#allocation2 + $0x20] sm:$0xff] %v393
      %410 = vst [vmem:[#allocation2 + $0x28] sm:$0xff] %v394
      %411 = vst [vmem:[#allocation2 + $0x30] sm:$0xff] %v395
      %412 = vst [vmem:[#allocation2 + $0x38] sm:$0xff] %v396
      %413 = vst [vmem:[#allocation2 + $0x40] sm:$0xff] %v397
      %414 = vst [vmem:[#allocation2 + $0x48] sm:$0xff] %v398
      %415 = vst [vmem:[#allocation2 + $0x50] sm:$0xff] %v399
      %416 = vst [vmem:[#allocation2 + $0x58] sm:$0xff] %v400
      %417 = vst [vmem:[#allocation2 + $0x60] sm:$0xff] %v401
      %418 = vst [vmem:[#allocation2 + $0x68] sm:$0xff] %v402
      %419 = vst [vmem:[#allocation2 + $0x70] sm:$0xff] %v403
      %420 = vst [vmem:[#allocation2 + $0x78] sm:$0xff] %v404
    $region17: #{_target_gram_impl.1} parent=1 // pred_fallthru
      _
    // Predicated region
    $region18: #{_target_gram_impl.1} parent=1 // pred_check
      _
    $region19: #{_target_gram_impl.1} parent=1 // pred_check_branch
      %422 = sbr.rel (0) target = $region21
    $region20: #{_target_gram_impl.1} parent=1 // pred_region
      %s424 = ssub.s32 2048, 2048
      %425 = vsyncadd [#allocation3], %s424
      %s426 = sshll.u32 [#allocation2], 4
      %s427 = int_to_ptr.vmem [resolvable:$true] %s426
      %432 = dma.vmem_to_hbm [thread:$0]  %s427, 2048, %s2, [#allocation3], 128, 128, 8
    $region21: #{_target_gram_impl.1} parent=1 // pred_fallthru
      _
    // Predicated region
    $region22: #{_target_gram_impl.1} parent=1 // pred_check
      _
    $region23: #{_target_gram_impl.1} parent=1 // pred_check_branch
      %434 = sbr.rel (0) target = $region25
    $region24: #{_target_gram_impl.1} parent=1 // pred_region
      %435 = dma.done [#allocation3], 2048
    $region25: #{_target_gram_impl.1} parent=1 // pred_fallthru
      _
    %436 = vsyncpa [#allocation3], 1

</llo_original>
